<compile_context>
chip_gen: v7x
topology: tpu7x:2x2x1
jax: 0.10.0
libtpu: 0.0.40
codegen_flags: <defaults>
</compile_context>

<pallas_src>
import jax
import jax.numpy as jnp
from jax.experimental import pallas as pl
from jax.experimental.pallas import tpu as pltpu

LANE = 128
_TARGET_BLOCK_BYTES = 2 * 1024 * 1024      # ~2 MiB per operand block
_WIDTH_CANDIDATES = (4096, 2048, 1024, 512, 256, 128)


def _fusion_kernel(alpha_ref, a_ref, b_ref, o_ref):
    # alpha_ref : SMEM (1, 1) f32 scalar
    # a_ref/b_ref/o_ref : VMEM (block_rows, width) tiles
    alpha = alpha_ref[0, 0]
    a = a_ref[...].astype(jnp.float32)
    b = b_ref[...].astype(jnp.float32)
    # b + alpha * (a - b)  ==  alpha * a + (1 - alpha) * b
    o_ref[...] = (b + alpha * (a - b)).astype(o_ref.dtype)


def _choose_layout(n, itemsize):
    """Pick a lane-dense (rows, width) slab layout for n elements.

    Returns (rows, width, sublane, pad_elems). pad_elems is 0 whenever a wide
    width (multiple of 128) divides n exactly, which is the common case.
    """
    # Native packed sublane count per dtype: 8 for 32-bit, 16 for 16-bit, 32 for 8-bit.
    sublane = max(8, 32 // max(1, itemsize))
    for w in _WIDTH_CANDIDATES:
        if n % w == 0:
            return n // w, w, sublane, 0
    # Rare ragged fallback: pad the tail up to one lane width (<128 elems).
    # TODO(synk): could be handled with a full-extent tail block instead of a pad copy.
    w = LANE
    padded = pl.cdiv(n, w) * w
    return padded // w, w, sublane, padded - n


def ensemble_forward(fusion_parameter, output_A, output_B):
    """alpha * A + (1 - alpha) * B, computed in a Pallas TPU kernel."""
    assert output_A.shape == output_B.shape
    assert output_A.dtype == output_B.dtype
    orig_shape = output_A.shape
    dtype = output_A.dtype
    itemsize = jnp.dtype(dtype).itemsize

    n = 1
    for d in orig_shape:
        n *= d

    rows, width, sublane, pad = _choose_layout(n, itemsize)

    a_flat = output_A.reshape(-1)
    b_flat = output_B.reshape(-1)
    if pad:
        a_flat = jnp.pad(a_flat, (0, pad))
        b_flat = jnp.pad(b_flat, (0, pad))
    a2d = a_flat.reshape(rows, width)
    b2d = b_flat.reshape(rows, width)

    # Large blocks: ~2 MiB per operand, rows a multiple of the packed sublane
    # count. If the whole slab is smaller than that, use a single full-extent
    # block (always a legal block shape).
    rows_per_block = max(
        sublane, (_TARGET_BLOCK_BYTES // (width * itemsize)) // sublane * sublane
    )
    block_rows = rows if rows <= rows_per_block else rows_per_block

    grid = (pl.cdiv(rows, block_rows),)

    alpha = jnp.asarray(fusion_parameter, jnp.float32).reshape(1, 1)

    out2d = pl.pallas_call(
        _fusion_kernel,
        out_shape=jax.ShapeDtypeStruct((rows, width), dtype),
        grid_spec=pltpu.PrefetchScalarGridSpec(
            num_scalar_prefetch=0,
            grid=grid,
            in_specs=[
                pl.BlockSpec(memory_space=pltpu.MemorySpace.SMEM),
                pl.BlockSpec((block_rows, width), lambda i: (i, 0)),
                pl.BlockSpec((block_rows, width), lambda i: (i, 0)),
            ],
            out_specs=pl.BlockSpec((block_rows, width), lambda i: (i, 0)),
        ),
        compiler_params=pltpu.CompilerParams(
            dimension_semantics=("parallel",),
            vmem_limit_bytes=32 * 1024 * 1024,
        ),
    )(alpha, a2d, b2d)

    out = out2d.reshape(-1)
    if pad:
        out = out[:n]
    return out.reshape(orig_shape)


if __name__ == "__main__":
    # Deterministic parameter init (mirrors nn.Parameter(torch.tensor(0.5)))
    fusion_parameter = jnp.float32(0.5)

    # Example "outputs of model_A / model_B" — NCHW like PyTorch conv nets.
    key = jax.random.PRNGKey(0)
    k_a, k_b = jax.random.split(key)
    output_A = jax.random.normal(k_a, (2, 4, 16, 16), dtype=jnp.float32)
    output_B = jax.random.normal(k_b, (2, 4, 16, 16), dtype=jnp.float32)

    out = ensemble_forward(fusion_parameter, output_A, output_B)
    out = jax.block_until_ready(out)

    ref = fusion_parameter * output_A + (1.0 - fusion_parameter) * output_B
    assert out.shape == ref.shape and out.dtype == ref.dtype
    assert jnp.allclose(out, ref, atol=1e-6, rtol=1e-6)

    # Also exercise the ragged fallback path (shape not a multiple of 128).
    k_c, k_d = jax.random.split(k_b)
    odd_A = jax.random.normal(k_c, (3, 5, 7), dtype=jnp.float32)
    odd_B = jax.random.normal(k_d, (3, 5, 7), dtype=jnp.float32)
    odd_out = jax.block_until_ready(ensemble_forward(fusion_parameter, odd_A, odd_B))
    odd_ref = fusion_parameter * odd_A + (1.0 - fusion_parameter) * odd_B
    assert odd_out.shape == odd_ref.shape
    assert jnp.allclose(odd_out, odd_ref, atol=1e-6, rtol=1e-6)

    print("KERNEL_OK")
</pallas_src>

<mosaic_0001>
module attributes {stable_mosaic.version = 11 : i64} {
  func.func @_fusion_kernel(%arg0: i32, %arg1: memref<1x1xf32, #tpu.memory_space<smem>>, %arg2: memref<1x2048xf32, #tpu.memory_space<vmem>>, %arg3: memref<1x2048xf32, #tpu.memory_space<vmem>>, %arg4: memref<1x2048xf32, #tpu.memory_space<vmem>>) attributes {dimension_semantics = [#tpu.dimension_semantics<parallel>], iteration_bounds = array<i64: 1>, scalar_prefetch = 0 : i64, scratch_operands = 0 : i64, tpu.core_type = #tpu.core_type<tc>, window_params = [{transform_indices = @transform_0, window_bounds = array<i64: 1, 1>}, {transform_indices = @transform_1, window_bounds = array<i64: 1, 2048>}, {transform_indices = @transform_2, window_bounds = array<i64: 1, 2048>}, {transform_indices = @transform_3, window_bounds = array<i64: 1, 2048>}]} {
    %c0 = arith.constant 0 : index
    %c0_0 = arith.constant 0 : index
    %0 = memref.load %arg1[%c0, %c0_0] : memref<1x1xf32, #tpu.memory_space<smem>>
    %c0_1 = arith.constant 0 : index
    %c0_2 = arith.constant 0 : index
    %1 = vector.load %arg2[%c0_1, %c0_2] : memref<1x2048xf32, #tpu.memory_space<vmem>>, vector<1x2048xf32>
    %c0_3 = arith.constant 0 : index
    %c0_4 = arith.constant 0 : index
    %2 = vector.load %arg3[%c0_3, %c0_4] : memref<1x2048xf32, #tpu.memory_space<vmem>>, vector<1x2048xf32>
    %3 = arith.subf %1, %2 : vector<1x2048xf32>
    %4 = vector.broadcast %0 : f32 to vector<1x2048xf32>
    %5 = arith.mulf %4, %3 : vector<1x2048xf32>
    %6 = arith.addf %2, %5 : vector<1x2048xf32>
    %c0_5 = arith.constant 0 : index
    %c0_6 = arith.constant 0 : index
    %7 = vector.load %arg4[%c0_5, %c0_6] : memref<1x2048xf32, #tpu.memory_space<vmem>>, vector<1x2048xf32>
    tpu.vector_store %arg4[%c0_5, %c0_6], %6 {strides = array<i32>} : memref<1x2048xf32, #tpu.memory_space<vmem>>, vector<1x2048xf32>,
    return
  }
  func.func @transform_0(%arg0: i32) -> (i32, i32) {
    %c0_i32 = arith.constant 0 : i32
    %c0_i32_0 = arith.constant 0 : i32
    %c0_i32_1 = arith.constant 0 : i32
    return %c0_i32, %c0_i32_0 : i32, i32
  }
  func.func @transform_1(%arg0: i32) -> (i32, i32) {
    %c0_i32 = arith.constant 0 : i32
    %c0_i32_0 = arith.constant 0 : i32
    return %arg0, %c0_i32 : i32, i32
  }
  func.func @transform_2(%arg0: i32) -> (i32, i32) {
    %c0_i32 = arith.constant 0 : i32
    %c0_i32_0 = arith.constant 0 : i32
    return %arg0, %c0_i32 : i32, i32
  }
  func.func @transform_3(%arg0: i32) -> (i32, i32) {
    %c0_i32 = arith.constant 0 : i32
    %c0_i32_0 = arith.constant 0 : i32
    return %arg0, %c0_i32 : i32, i32
  }
}

</mosaic_0001>

<llo_original>
// kernel: tpu_custom_call.1
$region0: #{tpu_custom_call.1}
  #allocation0 [shape = 'u32[]', space=smem, size = 0x4, offset = 0x4, fixed_abs, tag = 'smem constant byte address 0x4 - core index']
  #allocation1 [shape = 'u32[144,128]{1,0:T(1,128)}', space=vmem, size = 0x12000, scoped, tag = 'internal scratch']
  #allocation2 [shape = 'f32[1,1]{1,0:T(1,128)S(6)}', space=smem, size = 0x200, scoped, tag = 'scoped memory for tpu_custom_call.1']
  %s0 = inlined_call_operand.<no memory space> [shape: f32[1,1], index: 0, kind: input, shape index: {}]
  %s1 = inlined_call_operand.hbm [shape: f32[1,2048], index: 1, kind: input, shape index: {}]
  %s2 = inlined_call_operand.hbm [shape: f32[1,2048], index: 2, kind: input, shape index: {}]
  %s3 = inlined_call_operand.hbm [shape: f32[1,2048], index: 3, kind: output, shape index: {}]
  %s4 = sld [smem:[#allocation0]]
  $region30: #{tpu_custom_call.1} parent=0
    _
  %s6 = ssub.s32 1, %s4
  %s7 = scalar_select 0, %s6, %s4
  %8 = sst [smem:[#allocation2]] %s0
  $region1: #{tpu_custom_call.1} parent=0
    #allocation3 [shape = 'u8[8192]{0}', space=vmem, size = 0x2000, scoped, tag = 'input window, operand 1, single buffered']
    #allocation4 [shape = 's32[1]{0}', space=sflag, size = 0x4, scoped, tag = 'scoped memory for tpu_custom_call.1']
    #allocation5 [shape = 's32[1]{0}', space=sflag, size = 0x4, scoped, tag = 'scoped memory for tpu_custom_call.1']
    #allocation6 [shape = 'u8[8192]{0}', space=vmem, size = 0x2000, scoped, tag = 'input window, operand 2, single buffered']
    #allocation7 [shape = 's32[1]{0}', space=sflag, size = 0x4, scoped, tag = 'scoped memory for tpu_custom_call.1']
    #allocation8 [shape = 'u8[8192]{0}', space=vmem, size = 0x2000, scoped, tag = 'output window, operand 0, single buffered']
    %9 = vsyncpa [#allocation4], 0
    %10 = vsyncpa [#allocation7], 0
    %11 = vsyncpa [#allocation5], 0
    // Predicated region
    $region2: #{tpu_custom_call.1} parent=1 // pred_check
      _
    $region3: #{tpu_custom_call.1} parent=1 // pred_check_branch
      %13 = sbr.rel (0) target = $region5
    $region4: #{tpu_custom_call.1} parent=1 // pred_region
      _
    $region5: #{tpu_custom_call.1} parent=1 // pred_fallthru
      _
    // Predicated region
    $region6: #{tpu_custom_call.1} parent=1 // pred_check
      _
    $region7: #{tpu_custom_call.1} parent=1 // pred_check_branch
      %15 = sbr.rel (0) target = $region9
    $region8: #{tpu_custom_call.1} parent=1 // pred_region
      %s17 = ssub.s32 256, 256
      %18 = vsyncadd [#allocation4], %s17
      %s20 = sshll.u32 [#allocation3], 4
      %s21 = int_to_ptr.vmem [resolvable:$true] %s20
      %23 = dma.hbm_to_vmem [thread:$0]  %s1, 256, %s21, [#allocation4]
    $region9: #{tpu_custom_call.1} parent=1 // pred_fallthru
      _
    // Predicated region
    $region10: #{tpu_custom_call.1} parent=1 // pred_check
      _
    $region11: #{tpu_custom_call.1} parent=1 // pred_check_branch
      %25 = sbr.rel (0) target = $region13
    $region12: #{tpu_custom_call.1} parent=1 // pred_region
      %s27 = ssub.s32 256, 256
      %28 = vsyncadd [#allocation7], %s27
      %s30 = sshll.u32 [#allocation6], 4
      %s31 = int_to_ptr.vmem [resolvable:$true] %s30
      %33 = dma.hbm_to_vmem [thread:$0]  %s2, 256, %s31, [#allocation7]
    $region13: #{tpu_custom_call.1} parent=1 // pred_fallthru
      _
    // Predicated region
    $region14: #{tpu_custom_call.1} parent=1 // pred_check
      _
    $region15: #{tpu_custom_call.1} parent=1 // pred_check_branch
      %35 = sbr.rel (0) target = $region17
    $region16: #{tpu_custom_call.1} parent=1 // pred_region
      %36 = dma.done [#allocation4], 256
    $region17: #{tpu_custom_call.1} parent=1 // pred_fallthru
      _
    // Predicated region
    $region18: #{tpu_custom_call.1} parent=1 // pred_check
      _
    $region19: #{tpu_custom_call.1} parent=1 // pred_check_branch
      %38 = sbr.rel (0) target = $region21
    $region20: #{tpu_custom_call.1} parent=1 // pred_region
      %39 = dma.done [#allocation7], 256
    $region21: #{tpu_custom_call.1} parent=1 // pred_fallthru
      _
    %s40 = sld [smem:[#allocation2]]
    %v41 = vld [vmem:[#allocation3] sm:$0xff]
    %v42 = vld [vmem:[#allocation3 + $0x8] sm:$0xff]
    %v43 = vld [vmem:[#allocation6] sm:$0xff]
    %v44 = vld [vmem:[#allocation6 + $0x8] sm:$0xff]
    %v45 = vsub.f32 %v41, %v43
    %v46 = vsub.f32 %v42, %v44
    %v47 = vstv %s40
    %v48 = vmul.f32 %v47, %v45
    %v49 = vmul.f32 %v47, %v46
    %v50 = vadd.f32 %v43, %v48
    %v51 = vadd.f32 %v44, %v49
    %52 = vst [vmem:[#allocation8] sm:$0xff] %v50
    %53 = vst [vmem:[#allocation8 + $0x8] sm:$0xff] %v51
    // Predicated region
    $region22: #{tpu_custom_call.1} parent=1 // pred_check
      _
    $region23: #{tpu_custom_call.1} parent=1 // pred_check_branch
      %55 = sbr.rel (0) target = $region25
    $region24: #{tpu_custom_call.1} parent=1 // pred_region
      %s57 = ssub.s32 256, 256
      %58 = vsyncadd [#allocation5], %s57
      %s60 = sshll.u32 [#allocation8], 4
      %s61 = int_to_ptr.vmem [resolvable:$true] %s60
      %63 = dma.vmem_to_hbm [thread:$0]  %s61, 256, %s3, [#allocation5]
    $region25: #{tpu_custom_call.1} parent=1 // pred_fallthru
      _
    // Predicated region
    $region26: #{tpu_custom_call.1} parent=1 // pred_check
      _
    $region27: #{tpu_custom_call.1} parent=1 // pred_check_branch
      %65 = sbr.rel (0) target = $region29
    $region28: #{tpu_custom_call.1} parent=1 // pred_region
      %66 = dma.done [#allocation5], 256
    $region29: #{tpu_custom_call.1} parent=1 // pred_fallthru
      _
    %67 = vsyncpa [#allocation4], 1
    %68 = vsyncpa [#allocation7], 1
    %69 = vsyncpa [#allocation5], 1

</llo_original>
